<compile_context>
chip_gen: v7x
topology: tpu7x:2x2x1
jax: 0.10.0
libtpu: 0.0.40
codegen_flags: <defaults>
</compile_context>

<pallas_src>
import jax
import jax.numpy as jnp
from jax.experimental import pallas as pl
from jax.experimental.pallas import tpu as pltpu


def _critic_kernel(xT_ref, w1T_ref, b1_ref, w2T_ref, b2_ref, w3_ref, b3_ref, o_ref):
    # xT: (S, tb), w1T: (H, S), w2T: (H, H), w3: (H, 1); biases (H, 1)/(1, 1).
    xT = xT_ref[...]

    # Layer 1: (H, S) @ (S, tb) -> (H, tb) on the MXU, f32 accumulation.
    h1 = jnp.dot(w1T_ref[...], xT, preferred_element_type=jnp.float32)
    h1 = jnp.maximum(h1 + b1_ref[...], 0.0)          # bias (H,1) broadcasts over lanes

    # Layer 2: (H, H) @ (H, tb) -> (H, tb).
    h2 = jnp.dot(w2T_ref[...], h1.astype(w2T_ref.dtype),
                 preferred_element_type=jnp.float32)
    h2 = jnp.maximum(h2 + b2_ref[...], 0.0)

    # Layer 3 (H -> 1): elementwise mul + sublane reduce (VPU + XLU) instead of
    # a wasteful N=1 MXU matmul.
    v = jnp.sum(h2 * w3_ref[...].astype(jnp.float32), axis=0, keepdims=True)
    v = v + b3_ref[...]                               # (1, tb), lane-dense

    o_ref[...] = v.astype(o_ref.dtype)


def critic_forward(state, params, *, block_b=None, compute_dtype=None):
    """state: (B, state_dim) float32. Returns (B, 1) float32.

    compute_dtype: optionally cast state/weights (e.g. jnp.bfloat16 on v6e/v7x)
    for the MXU matmuls; accumulation and bias/ReLU stay in float32.
    """
    w1, b1, w2, b2, w3, b3 = params
    B, S = state.shape
    H = w1.shape[1]

    # ---- pick a lane-dense batch tile --------------------------------------
    if block_b is None:
        if B <= 256:
            block_b = B        # single full-extent tile (legal for any B)
        else:
            block_b = 512      # multiple of 128; sweep 512..2048 if tuning
    Bp = -(-B // block_b) * block_b          # pad batch up to a tile multiple
    if block_b != Bp:
        assert block_b % 128 == 0, (
            "block_b must be a multiple of 128 lanes unless it covers the whole "
            f"(padded) batch; got block_b={block_b}, padded batch={Bp}")
    grid = (Bp // block_b,)

    # ---- host-side layout plumbing: batch on the 128-lane axis --------------
    xT = state.T                                        # (S, B)
    if Bp != B:
        xT = jnp.pad(xT, ((0, 0), (0, Bp - B)))         # zero rows sliced off below
    w1T = w1.T                                          # (H, S)
    w2T = w2.T                                          # (H, H)
    b1c = b1.reshape(H, 1).astype(jnp.float32)
    b2c = b2.reshape(H, 1).astype(jnp.float32)
    w3c = w3.reshape(H, 1)
    b3c = b3.reshape(1, 1).astype(jnp.float32)

    if compute_dtype is not None:
        xT = xT.astype(compute_dtype)
        w1T = w1T.astype(compute_dtype)
        w2T = w2T.astype(compute_dtype)
        w3c = w3c.astype(compute_dtype)

    # Advisory cost hint for XLA's scheduler.
    flops = 2 * Bp * (S * H + H * H + H)
    bytes_accessed = int(
        xT.size * xT.dtype.itemsize
        + sum(a.size * a.dtype.itemsize for a in (w1T, b1c, w2T, b2c, w3c, b3c))
        + Bp * 4
    )
    cost = pl.CostEstimate(flops=flops, transcendentals=0,
                           bytes_accessed=bytes_accessed)

    # Weights/biases are tiny (~21 KB): each grid step gets the full block.
    full2 = lambda shape: pl.BlockSpec(shape, lambda i: (0, 0))

    outT = pl.pallas_call(
        _critic_kernel,
        out_shape=jax.ShapeDtypeStruct((1, Bp), jnp.float32),
        grid_spec=pltpu.PrefetchScalarGridSpec(
            num_scalar_prefetch=0,
            grid=grid,
            in_specs=[
                pl.BlockSpec((S, block_b), lambda i: (0, i)),   # state tile (lane-dense)
                full2((H, S)),                                   # w1T
                full2((H, 1)),                                   # b1
                full2((H, H)),                                   # w2T
                full2((H, 1)),                                   # b2
                full2((H, 1)),                                   # w3
                full2((1, 1)),                                   # b3
            ],
            out_specs=pl.BlockSpec((1, block_b), lambda i: (0, i)),
        ),
        compiler_params=pltpu.CompilerParams(
            dimension_semantics=("parallel",),   # shards batch tiles across v7x TCs
            # NOTE: tiles here are <1 MiB; set vmem_limit_bytes only if block_b
            # is swept above ~4K rows (v5e scoped default is 16 MiB).
        ),
        cost_estimate=cost,
    )(xT, w1T, b1c, w2T, b2c, w3c, b3c)

    return outT[:, :B].T                     # back to the module's (B, 1) shape


def init_critic_params(key, state_dim, hidden_dim=64):
    """Deterministic init matching PyTorch nn.Linear shapes.
    (Uniform(-1/sqrt(fan_in), 1/sqrt(fan_in)), like torch's default.)"""
    def linear(k, fan_in, fan_out):
        kw, kb = jax.random.split(k)
        bound = 1.0 / jnp.sqrt(jnp.float32(fan_in))
        # Stored as (in, out); critic_forward transposes for the kernel layout.
        w = jax.random.uniform(kw, (fan_in, fan_out), jnp.float32, -bound, bound)
        b = jax.random.uniform(kb, (1, fan_out), jnp.float32, -bound, bound)
        return w, b

    k1, k2, k3 = jax.random.split(key, 3)
    w1, b1 = linear(k1, state_dim, hidden_dim)
    w2, b2 = linear(k2, hidden_dim, hidden_dim)
    w3, b3 = linear(k3, hidden_dim, 1)
    return (w1, b1, w2, b2, w3, b3)


def critic_reference(state, params):
    """Pure-JAX reference for correctness check."""
    w1, b1, w2, b2, w3, b3 = params
    h = jnp.maximum(state @ w1 + b1, 0.0)
    h = jnp.maximum(h @ w2 + b2, 0.0)
    return h @ w3 + b3


if __name__ == "__main__":
    key = jax.random.PRNGKey(0)
    kp, kx1, kx2 = jax.random.split(key, 3)

    state_dim = 16
    hidden_dim = 64
    params = init_critic_params(kp, state_dim, hidden_dim)

    # Small demo shape: single full-extent batch tile.
    state_small = jax.random.normal(kx1, (8, state_dim), jnp.float32)
    out_small = jax.block_until_ready(critic_forward(state_small, params))
    ref_small = critic_reference(state_small, params)
    assert out_small.shape == (8, 1), out_small.shape
    assert jnp.allclose(out_small, ref_small, atol=1e-5, rtol=1e-5)

    # Non-aligned batch: exercises zero-padding + 2-step "parallel" grid
    # (512-row, 128-lane-aligned tiles).
    state_big = jax.random.normal(kx2, (777, state_dim), jnp.float32)
    out_big = jax.block_until_ready(critic_forward(state_big, params))
    ref_big = critic_reference(state_big, params)
    assert out_big.shape == (777, 1), out_big.shape
    assert jnp.allclose(out_big, ref_big, atol=1e-4, rtol=1e-4)

    print("KERNEL_OK")
</pallas_src>

<mosaic_0001>
module attributes {stable_mosaic.version = 11 : i64} {
  func.func @_critic_kernel(%arg0: i32, %arg1: memref<16x8xf32, #tpu.memory_space<vmem>>, %arg2: memref<64x16xf32, #tpu.memory_space<vmem>>, %arg3: memref<64x1xf32, #tpu.memory_space<vmem>>, %arg4: memref<64x64xf32, #tpu.memory_space<vmem>>, %arg5: memref<64x1xf32, #tpu.memory_space<vmem>>, %arg6: memref<64x1xf32, #tpu.memory_space<vmem>>, %arg7: memref<1x1xf32, #tpu.memory_space<vmem>>, %arg8: memref<1x8xf32, #tpu.memory_space<vmem>>) attributes {dimension_semantics = [#tpu.dimension_semantics<parallel>], iteration_bounds = array<i64: 1>, scalar_prefetch = 0 : i64, scratch_operands = 0 : i64, tpu.core_type = #tpu.core_type<tc>, window_params = [{transform_indices = @transform_0, window_bounds = array<i64: 16, 8>}, {pipeline_mode = #tpu.pipeline_mode<synchronous>, transform_indices = @transform_1, window_bounds = array<i64: 64, 16>}, {pipeline_mode = #tpu.pipeline_mode<synchronous>, transform_indices = @transform_2, window_bounds = array<i64: 64, 1>}, {pipeline_mode = #tpu.pipeline_mode<synchronous>, transform_indices = @transform_3, window_bounds = array<i64: 64, 64>}, {pipeline_mode = #tpu.pipeline_mode<synchronous>, transform_indices = @transform_4, window_bounds = array<i64: 64, 1>}, {pipeline_mode = #tpu.pipeline_mode<synchronous>, transform_indices = @transform_5, window_bounds = array<i64: 64, 1>}, {pipeline_mode = #tpu.pipeline_mode<synchronous>, transform_indices = @transform_6, window_bounds = array<i64: 1, 1>}, {transform_indices = @transform_7, window_bounds = array<i64: 1, 8>}]} {
    %c0 = arith.constant 0 : index
    %c0_0 = arith.constant 0 : index
    %0 = vector.load %arg1[%c0, %c0_0] : memref<16x8xf32, #tpu.memory_space<vmem>>, vector<16x8xf32>
    %c0_1 = arith.constant 0 : index
    %c0_2 = arith.constant 0 : index
    %1 = vector.load %arg2[%c0_1, %c0_2] : memref<64x16xf32, #tpu.memory_space<vmem>>, vector<64x16xf32>
    %cst = arith.constant dense<0.000000e+00> : vector<64x8xf32>
    %2 = tpu.matmul %1, %0, %cst {dimension_numbers = #tpu.dot_dimension_numbers<[1], [0], [0], [1], [0, 0, 1, 1], [], []>} : vector<64x16xf32>, vector<16x8xf32>, vector<64x8xf32> -> vector<64x8xf32>
    %c0_3 = arith.constant 0 : index
    %c0_4 = arith.constant 0 : index
    %3 = vector.load %arg3[%c0_3, %c0_4] : memref<64x1xf32, #tpu.memory_space<vmem>>, vector<64x1xf32>
    %4 = vector.broadcast %3 : vector<64x1xf32> to vector<64x8xf32>
    %5 = arith.addf %2, %4 : vector<64x8xf32>
    %cst_5 = arith.constant 0.000000e+00 : f32
    %6 = vector.broadcast %cst_5 : f32 to vector<64x8xf32>
    %7 = arith.maximumf %5, %6 : vector<64x8xf32>
    %c0_6 = arith.constant 0 : index
    %c0_7 = arith.constant 0 : index
    %8 = vector.load %arg4[%c0_6, %c0_7] : memref<64x64xf32, #tpu.memory_space<vmem>>, vector<64x64xf32>
    %cst_8 = arith.constant dense<0.000000e+00> : vector<64x8xf32>
    %9 = tpu.matmul %8, %7, %cst_8 {dimension_numbers = #tpu.dot_dimension_numbers<[1], [0], [0], [1], [0, 0, 1, 1], [], []>} : vector<64x64xf32>, vector<64x8xf32>, vector<64x8xf32> -> vector<64x8xf32>
    %c0_9 = arith.constant 0 : index
    %c0_10 = arith.constant 0 : index
    %10 = vector.load %arg5[%c0_9, %c0_10] : memref<64x1xf32, #tpu.memory_space<vmem>>, vector<64x1xf32>
    %11 = vector.broadcast %10 : vector<64x1xf32> to vector<64x8xf32>
    %12 = arith.addf %9, %11 : vector<64x8xf32>
    %cst_11 = arith.constant 0.000000e+00 : f32
    %13 = vector.broadcast %cst_11 : f32 to vector<64x8xf32>
    %14 = arith.maximumf %12, %13 : vector<64x8xf32>
    %c0_12 = arith.constant 0 : index
    %c0_13 = arith.constant 0 : index
    %15 = vector.load %arg6[%c0_12, %c0_13] : memref<64x1xf32, #tpu.memory_space<vmem>>, vector<64x1xf32>
    %16 = vector.broadcast %15 : vector<64x1xf32> to vector<64x8xf32>
    %17 = arith.mulf %14, %16 : vector<64x8xf32>
    %cst_14 = arith.constant dense<0.000000e+00> : vector<8xf32>
    %18 = vector.multi_reduction <add>, %17, %cst_14 [0] : vector<64x8xf32> to vector<8xf32>
    %19 = vector.shape_cast %18 : vector<8xf32> to vector<1x8xf32>
    %c0_15 = arith.constant 0 : index
    %c0_16 = arith.constant 0 : index
    %20 = vector.load %arg7[%c0_15, %c0_16] : memref<1x1xf32, #tpu.memory_space<vmem>>, vector<1x1xf32>
    %21 = vector.broadcast %20 : vector<1x1xf32> to vector<1x8xf32>
    %22 = arith.addf %19, %21 : vector<1x8xf32>
    %c0_17 = arith.constant 0 : index
    %c0_18 = arith.constant 0 : index
    %23 = vector.load %arg8[%c0_17, %c0_18] : memref<1x8xf32, #tpu.memory_space<vmem>>, vector<1x8xf32>
    tpu.vector_store %arg8[%c0_17, %c0_18], %22 {strides = array<i32>} : memref<1x8xf32, #tpu.memory_space<vmem>>, vector<1x8xf32>,
    return
  }
  func.func @transform_0(%arg0: i32) -> (i32, i32) {
    %c0_i32 = arith.constant 0 : i32
    %c0_i32_0 = arith.constant 0 : i32
    return %c0_i32, %arg0 : i32, i32
  }
  func.func @transform_1(%arg0: i32) -> (i32, i32) {
    %c0_i32 = arith.constant 0 : i32
    %c0_i32_0 = arith.constant 0 : i32
    %c0_i32_1 = arith.constant 0 : i32
    return %c0_i32, %c0_i32_0 : i32, i32
  }
  func.func @transform_2(%arg0: i32) -> (i32, i32) {
    %c0_i32 = arith.constant 0 : i32
    %c0_i32_0 = arith.constant 0 : i32
    %c0_i32_1 = arith.constant 0 : i32
    return %c0_i32, %c0_i32_0 : i32, i32
  }
  func.func @transform_3(%arg0: i32) -> (i32, i32) {
    %c0_i32 = arith.constant 0 : i32
    %c0_i32_0 = arith.constant 0 : i32
    %c0_i32_1 = arith.constant 0 : i32
    return %c0_i32, %c0_i32_0 : i32, i32
  }
  func.func @transform_4(%arg0: i32) -> (i32, i32) {
    %c0_i32 = arith.constant 0 : i32
    %c0_i32_0 = arith.constant 0 : i32
    %c0_i32_1 = arith.constant 0 : i32
    return %c0_i32, %c0_i32_0 : i32, i32
  }
  func.func @transform_5(%arg0: i32) -> (i32, i32) {
    %c0_i32 = arith.constant 0 : i32
    %c0_i32_0 = arith.constant 0 : i32
    %c0_i32_1 = arith.constant 0 : i32
    return %c0_i32, %c0_i32_0 : i32, i32
  }
  func.func @transform_6(%arg0: i32) -> (i32, i32) {
    %c0_i32 = arith.constant 0 : i32
    %c0_i32_0 = arith.constant 0 : i32
    %c0_i32_1 = arith.constant 0 : i32
    return %c0_i32, %c0_i32_0 : i32, i32
  }
  func.func @transform_7(%arg0: i32) -> (i32, i32) {
    %c0_i32 = arith.constant 0 : i32
    %c0_i32_0 = arith.constant 0 : i32
    return %c0_i32, %arg0 : i32, i32
  }
}

</mosaic_0001>

<llo_original>
// kernel: tpu_custom_call.1
$region0: #{tpu_custom_call.1}
  #allocation0 [shape = 'u32[]', space=smem, size = 0x4, offset = 0x4, fixed_abs, tag = 'smem constant byte address 0x4 - core index']
  #allocation1 [shape = 'u32[144,128]{1,0:T(1,128)}', space=vmem, size = 0x12000, scoped, tag = 'internal scratch']
  #allocation2 [shape = 'f32[1,1]{1,0:T(1,128)S(1)}', space=vmem, size = 0x200, scoped, tag = 'scoped memory for tpu_custom_call.1']
  %s0 = inlined_call_operand.vmem [shape: f32[16,8], index: 0, kind: input, shape index: {}]
  %s1 = inlined_call_operand.vmem [shape: f32[64,16], index: 1, kind: input, shape index: {}]
  %s2 = inlined_call_operand.vmem [shape: f32[64,1], index: 2, kind: input, shape index: {}]
  %s3 = inlined_call_operand.vmem [shape: f32[64,64], index: 3, kind: input, shape index: {}]
  %s4 = inlined_call_operand.vmem [shape: f32[64,1], index: 4, kind: input, shape index: {}]
  %s5 = inlined_call_operand.vmem [shape: f32[64,1], index: 5, kind: input, shape index: {}]
  %s6 = inlined_call_operand.<no memory space> [shape: f32[1,1], index: 6, kind: input, shape index: {}]
  %s7 = inlined_call_operand.hbm [shape: f32[1,8], index: 7, kind: output, shape index: {}]
  %s8 = sld [smem:[#allocation0]]
  $region38: #{tpu_custom_call.1} parent=0
    _
  %s10 = ssub.s32 1, %s8
  %s11 = scalar_select 0, %s10, %s8
  %v12 = vstv %s6
  %13 = vst [vmem:[#allocation2] sm:$0x1] %v12
  $region1: #{tpu_custom_call.1} parent=0
    #allocation3 [shape = 'u8[512]{0}', space=vmem, size = 0x400, scoped, tag = 'output window, operand 0, single buffered']
    #allocation4 [shape = 's32[1]{0}', space=sflag, size = 0x4, scoped, tag = 'scoped memory for tpu_custom_call.1']
    %14 = vsyncpa [#allocation4], 0
    // Predicated region
    $region2: #{tpu_custom_call.1} parent=1 // pred_check
      _
    $region3: #{tpu_custom_call.1} parent=1 // pred_check_branch
      %16 = sbr.rel (0) target = $region5
    $region4: #{tpu_custom_call.1} parent=1 // pred_region
      _
    $region5: #{tpu_custom_call.1} parent=1 // pred_fallthru
      _
    // Predicated region
    $region6: #{tpu_custom_call.1} parent=1 // pred_check
      _
    $region7: #{tpu_custom_call.1} parent=1 // pred_check_branch
      %18 = sbr.rel (0) target = $region9
    $region8: #{tpu_custom_call.1} parent=1 // pred_region
      _
    $region9: #{tpu_custom_call.1} parent=1 // pred_fallthru
      _
    // Predicated region
    $region10: #{tpu_custom_call.1} parent=1 // pred_check
      _
    $region11: #{tpu_custom_call.1} parent=1 // pred_check_branch
      %20 = sbr.rel (0) target = $region13
    $region12: #{tpu_custom_call.1} parent=1 // pred_region
      _
    $region13: #{tpu_custom_call.1} parent=1 // pred_fallthru
      _
    // Predicated region
    $region14: #{tpu_custom_call.1} parent=1 // pred_check
      _
    $region15: #{tpu_custom_call.1} parent=1 // pred_check_branch
      %22 = sbr.rel (0) target = $region17
    $region16: #{tpu_custom_call.1} parent=1 // pred_region
      _
    $region17: #{tpu_custom_call.1} parent=1 // pred_fallthru
      _
    // Predicated region
    $region18: #{tpu_custom_call.1} parent=1 // pred_check
      _
    $region19: #{tpu_custom_call.1} parent=1 // pred_check_branch
      %24 = sbr.rel (0) target = $region21
    $region20: #{tpu_custom_call.1} parent=1 // pred_region
      _
    $region21: #{tpu_custom_call.1} parent=1 // pred_fallthru
      _
    // Predicated region
    $region22: #{tpu_custom_call.1} parent=1 // pred_check
      _
    $region23: #{tpu_custom_call.1} parent=1 // pred_check_branch
      %26 = sbr.rel (0) target = $region25
    $region24: #{tpu_custom_call.1} parent=1 // pred_region
      _
    $region25: #{tpu_custom_call.1} parent=1 // pred_fallthru
      _
    // Predicated region
    $region26: #{tpu_custom_call.1} parent=1 // pred_check
      _
    $region27: #{tpu_custom_call.1} parent=1 // pred_check_branch
      %28 = sbr.rel (0) target = $region29
    $region28: #{tpu_custom_call.1} parent=1 // pred_region
      _
    $region29: #{tpu_custom_call.1} parent=1 // pred_fallthru
      _
    %v29 = vld [vmem:[%s0] sm:$0xff]
    %v30 = vld [vmem:[%s0 + $0x8] sm:$0xff]
    %v31 = vld [vmem:[%s1] sm:$0xff]
    %v32 = vld [vmem:[%s1 + $0x8] sm:$0xff]
    %v33 = vld [vmem:[%s1 + $0x10] sm:$0xff]
    %v34 = vld [vmem:[%s1 + $0x18] sm:$0xff]
    %v35 = vld [vmem:[%s1 + $0x20] sm:$0xff]
    %v36 = vld [vmem:[%s1 + $0x28] sm:$0xff]
    %v37 = vld [vmem:[%s1 + $0x30] sm:$0xff]
    %v38 = vld [vmem:[%s1 + $0x38] sm:$0xff]
    %v39 = vld [vmem:[%s2] sm:$0xff]
    %v40 = vld [vmem:[%s2 + $0x8] sm:$0xff]
    %v41 = vld [vmem:[%s2 + $0x10] sm:$0xff]
    %v42 = vld [vmem:[%s2 + $0x18] sm:$0xff]
    %v43 = vld [vmem:[%s2 + $0x20] sm:$0xff]
    %v44 = vld [vmem:[%s2 + $0x28] sm:$0xff]
    %v45 = vld [vmem:[%s2 + $0x30] sm:$0xff]
    %v46 = vld [vmem:[%s2 + $0x38] sm:$0xff]
    %48 = vset.pattern.permute.xlu0 0
    %49 = vperm.xlu0 %48, %v39
    %v50 = vpop.permute.xlu0 %49
    %53 = vset.pattern.permute.xlu0 0
    %54 = vperm.xlu0 %53, %v40
    %v55 = vpop.permute.xlu0 %54
    %58 = vset.pattern.permute.xlu0 0
    %59 = vperm.xlu0 %58, %v41
    %v60 = vpop.permute.xlu0 %59
    %63 = vset.pattern.permute.xlu0 0
    %64 = vperm.xlu0 %63, %v42
    %v65 = vpop.permute.xlu0 %64
    %68 = vset.pattern.permute.xlu0 0
    %69 = vperm.xlu0 %68, %v43
    %v70 = vpop.permute.xlu0 %69
    %73 = vset.pattern.permute.xlu0 0
    %74 = vperm.xlu0 %73, %v44
    %v75 = vpop.permute.xlu0 %74
    %78 = vset.pattern.permute.xlu0 0
    %79 = vperm.xlu0 %78, %v45
    %v80 = vpop.permute.xlu0 %79
    %83 = vset.pattern.permute.xlu0 0
    %84 = vperm.xlu0 %83, %v46
    %v85 = vpop.permute.xlu0 %84
    %vm87 = vcmask 130048
    %v89 = vsel %vm87, %v31, 0
    %v92 = vsel %vm87, %v32, 0
    %v95 = vsel %vm87, %v33, 0
    %v98 = vsel %vm87, %v34, 0
    %v101 = vsel %vm87, %v35, 0
    %v104 = vsel %vm87, %v36, 0
    %v107 = vsel %vm87, %v37, 0
    %v110 = vsel %vm87, %v38, 0
    %112 = vmatprep.subr.mxu0 0.0
    %113 = vmatpush1.msra.mxu0 %v29
    %114 = vmatprep.subr.mxu0 0.0
    %115 = vmatpush1.msra.mxu0 %v30
    %116 = vmatprep.subr.mxu0 0.0
    %117 = vmatpush1.msra.mxu0 0.0
    %118 = vmatprep.subr.mxu0 0.0
    %119 = vmatpush1.msra.mxu0 0.0
    %120 = vmatprep.subr.mxu0 0.0
    %121 = vmatpush1.msra.mxu0 0.0
    %122 = vmatprep.subr.mxu0 0.0
    %123 = vmatpush1.msra.mxu0 0.0
    %124 = vmatprep.subr.mxu0 0.0
    %125 = vmatpush1.msra.mxu0 0.0
    %126 = vmatprep.subr.mxu0 0.0
    %127 = vmatpush1.msra.mxu0 0.0
    %128 = vmatprep.subr.mxu0 0.0
    %129 = vmatpush1.msra.mxu0 0.0
    %130 = vmatprep.subr.mxu0 0.0
    %131 = vmatpush1.msra.mxu0 0.0
    %132 = vmatprep.subr.mxu0 0.0
    %133 = vmatpush1.msra.mxu0 0.0
    %134 = vmatprep.subr.mxu0 0.0
    %135 = vmatpush1.msra.mxu0 0.0
    %136 = vmatprep.subr.mxu0 0.0
    %137 = vmatpush1.msra.mxu0 0.0
    %138 = vmatprep.subr.mxu0 0.0
    %139 = vmatpush1.msra.mxu0 0.0
    %140 = vmatprep.subr.mxu0 0.0
    %141 = vmatpush1.msra.mxu0 0.0
    %142 = vmatprep.subr.mxu0 0.0
    %143 = vmatpush1.msra.mxu0 0.0
    %144 = vmatprep.subr.mxu0 0.0
    %145 = vmatpush1.msra.mxu0 0.0
    %146 = vmatprep.subr.mxu0 0.0
    %147 = vmatpush1.msra.mxu0 0.0
    %148 = vmatprep.subr.mxu0 0.0
    %149 = vmatpush1.msra.mxu0 0.0
    %150 = vmatprep.subr.mxu0 0.0
    %151 = vmatpush1.msra.mxu0 0.0
    %152 = vmatprep.subr.mxu0 0.0
    %153 = vmatpush1.msra.mxu0 0.0
    %154 = vmatprep.subr.mxu0 0.0
    %155 = vmatpush1.msra.mxu0 0.0
    %156 = vmatprep.subr.mxu0 0.0
    %157 = vmatpush1.msra.mxu0 0.0
    %158 = vmatprep.subr.mxu0 0.0
    %159 = vmatpush1.msra.mxu0 0.0
    %160 = vmatprep.subr.mxu0 0.0
    %161 = vmatpush1.msra.mxu0 0.0
    %162 = vmatprep.subr.mxu0 0.0
    %163 = vmatpush1.msra.mxu0 0.0
    %164 = vmatprep.subr.mxu0 0.0
    %165 = vmatpush1.msra.mxu0 0.0
    %166 = vmatprep.subr.mxu0 0.0
    %167 = vmatpush1.msra.mxu0 0.0
    %168 = vmatprep.subr.mxu0 0.0
    %169 = vmatpush1.msra.mxu0 0.0
    %170 = vmatprep.subr.mxu0 0.0
    %171 = vmatpush1.msra.mxu0 0.0
    %172 = vmatprep.subr.mxu0 0.0
    %173 = vmatpush1.msra.mxu0 0.0
    %174 = vmatprep.subr.mxu0 0.0
    %175 = vmatpush1.msra.mxu0 0.0
    %176 = vmatprep.mubr.f32.mxu0 0.0
    %177 = vmatmul.mubr.f32.gmra.mrb[0].mxu0 %v89
    %v178 = vpop.f32.mrb[0].mxu0
    %v179 = vadd.f32 %v50, %v178
    %v180 = vpop.f32.mrb[0].mxu0
    %181 = vmatprep.mubr.f32.mxu0 0.0
    %182 = vmatmul.mubr.f32.gmra.mrb[0].mxu0 %v92
    %v183 = vpop.f32.mrb[0].mxu0
    %v184 = vadd.f32 %v55, %v183
    %v185 = vpop.f32.mrb[0].mxu0
    %186 = vmatprep.mubr.f32.mxu0 0.0
    %187 = vmatmul.mubr.f32.gmra.mrb[0].mxu0 %v95
    %v188 = vpop.f32.mrb[0].mxu0
    %v189 = vadd.f32 %v60, %v188
    %v190 = vpop.f32.mrb[0].mxu0
    %191 = vmatprep.mubr.f32.mxu0 0.0
    %192 = vmatmul.mubr.f32.gmra.mrb[0].mxu0 %v98
    %v193 = vpop.f32.mrb[0].mxu0
    %v194 = vadd.f32 %v65, %v193
    %v195 = vpop.f32.mrb[0].mxu0
    %196 = vmatprep.mubr.f32.mxu0 0.0
    %197 = vmatmul.mubr.f32.gmra.mrb[0].mxu0 %v101
    %v198 = vpop.f32.mrb[0].mxu0
    %v199 = vadd.f32 %v70, %v198
    %v200 = vpop.f32.mrb[0].mxu0
    %201 = vmatprep.mubr.f32.mxu0 0.0
    %202 = vmatmul.mubr.f32.gmra.mrb[0].mxu0 %v104
    %v203 = vpop.f32.mrb[0].mxu0
    %v204 = vadd.f32 %v75, %v203
    %v205 = vpop.f32.mrb[0].mxu0
    %206 = vmatprep.mubr.f32.mxu0 0.0
    %207 = vmatmul.mubr.f32.gmra.mrb[0].mxu0 %v107
    %v208 = vpop.f32.mrb[0].mxu0
    %v209 = vadd.f32 %v80, %v208
    %v210 = vpop.f32.mrb[0].mxu0
    %211 = vmatprep.mubr.f32.mxu0 0.0
    %212 = vmatmul.mubr.f32.gmra.mrb[0].mxu0 %v110
    %v213 = vpop.f32.mrb[0].mxu0
    %v214 = vadd.f32 %v85, %v213
    %v215 = vpop.f32.mrb[0].mxu0
    %216 = vdwg.mxu0
    %v217 = vmax.f32 %v179, 0.0
    %v218 = vmax.f32 %v184, 0.0
    %v219 = vmax.f32 %v189, 0.0
    %v220 = vmax.f32 %v194, 0.0
    %v221 = vmax.f32 %v199, 0.0
    %v222 = vmax.f32 %v204, 0.0
    %v223 = vmax.f32 %v209, 0.0
    %v224 = vmax.f32 %v214, 0.0
    %v225 = vld [vmem:[%s3] sm:$0xff]
    %v226 = vld [vmem:[%s3 + $0x8] sm:$0xff]
    %v227 = vld [vmem:[%s3 + $0x10] sm:$0xff]
    %v228 = vld [vmem:[%s3 + $0x18] sm:$0xff]
    %v229 = vld [vmem:[%s3 + $0x20] sm:$0xff]
    %v230 = vld [vmem:[%s3 + $0x28] sm:$0xff]
    %v231 = vld [vmem:[%s3 + $0x30] sm:$0xff]
    %v232 = vld [vmem:[%s3 + $0x38] sm:$0xff]
    %v233 = vld [vmem:[%s4] sm:$0xff]
    %v234 = vld [vmem:[%s4 + $0x8] sm:$0xff]
    %v235 = vld [vmem:[%s4 + $0x10] sm:$0xff]
    %v236 = vld [vmem:[%s4 + $0x18] sm:$0xff]
    %v237 = vld [vmem:[%s4 + $0x20] sm:$0xff]
    %v238 = vld [vmem:[%s4 + $0x28] sm:$0xff]
    %v239 = vld [vmem:[%s4 + $0x30] sm:$0xff]
    %v240 = vld [vmem:[%s4 + $0x38] sm:$0xff]
    %242 = vset.pattern.permute.xlu0 0
    %243 = vperm.xlu0 %242, %v233
    %v244 = vpop.permute.xlu0 %243
    %247 = vset.pattern.permute.xlu0 0
    %248 = vperm.xlu0 %247, %v234
    %v249 = vpop.permute.xlu0 %248
    %252 = vset.pattern.permute.xlu0 0
    %253 = vperm.xlu0 %252, %v235
    %v254 = vpop.permute.xlu0 %253
    %257 = vset.pattern.permute.xlu0 0
    %258 = vperm.xlu0 %257, %v236
    %v259 = vpop.permute.xlu0 %258
    %262 = vset.pattern.permute.xlu0 0
    %263 = vperm.xlu0 %262, %v237
    %v264 = vpop.permute.xlu0 %263
    %267 = vset.pattern.permute.xlu0 0
    %268 = vperm.xlu0 %267, %v238
    %v269 = vpop.permute.xlu0 %268
    %272 = vset.pattern.permute.xlu0 0
    %273 = vperm.xlu0 %272, %v239
    %v274 = vpop.permute.xlu0 %273
    %277 = vset.pattern.permute.xlu0 0
    %278 = vperm.xlu0 %277, %v240
    %v279 = vpop.permute.xlu0 %278
    %vm281 = vcmask 523264
    %v283 = vsel %vm281, %v225, 0
    %v286 = vsel %vm281, %v226, 0
    %v289 = vsel %vm281, %v227, 0
    %v292 = vsel %vm281, %v228, 0
    %v295 = vsel %vm281, %v229, 0
    %v298 = vsel %vm281, %v230, 0
    %v301 = vsel %vm281, %v231, 0
    %v304 = vsel %vm281, %v232, 0
    %306 = vmatprep.subr.mxu0 0.0
    %307 = vmatpush1.msra.mxu0 %v217
    %308 = vmatprep.subr.mxu0 0.0
    %309 = vmatpush1.msra.mxu0 %v218
    %310 = vmatprep.subr.mxu0 0.0
    %311 = vmatpush1.msra.mxu0 %v219
    %312 = vmatprep.subr.mxu0 0.0
    %313 = vmatpush1.msra.mxu0 %v220
    %314 = vmatprep.subr.mxu0 0.0
    %315 = vmatpush1.msra.mxu0 %v221
    %316 = vmatprep.subr.mxu0 0.0
    %317 = vmatpush1.msra.mxu0 %v222
    %318 = vmatprep.subr.mxu0 0.0
    %319 = vmatpush1.msra.mxu0 %v223
    %320 = vmatprep.subr.mxu0 0.0
    %321 = vmatpush1.msra.mxu0 %v224
    %322 = vmatprep.subr.mxu0 0.0
    %323 = vmatpush1.msra.mxu0 0.0
    %324 = vmatprep.subr.mxu0 0.0
    %325 = vmatpush1.msra.mxu0 0.0
    %326 = vmatprep.subr.mxu0 0.0
    %327 = vmatpush1.msra.mxu0 0.0
    %328 = vmatprep.subr.mxu0 0.0
    %329 = vmatpush1.msra.mxu0 0.0
    %330 = vmatprep.subr.mxu0 0.0
    %331 = vmatpush1.msra.mxu0 0.0
    %332 = vmatprep.subr.mxu0 0.0
    %333 = vmatpush1.msra.mxu0 0.0
    %334 = vmatprep.subr.mxu0 0.0
    %335 = vmatpush1.msra.mxu0 0.0
    %336 = vmatprep.subr.mxu0 0.0
    %337 = vmatpush1.msra.mxu0 0.0
    %338 = vmatprep.subr.mxu0 0.0
    %339 = vmatpush1.msra.mxu0 0.0
    %340 = vmatprep.subr.mxu0 0.0
    %341 = vmatpush1.msra.mxu0 0.0
    %342 = vmatprep.subr.mxu0 0.0
    %343 = vmatpush1.msra.mxu0 0.0
    %344 = vmatprep.subr.mxu0 0.0
    %345 = vmatpush1.msra.mxu0 0.0
    %346 = vmatprep.subr.mxu0 0.0
    %347 = vmatpush1.msra.mxu0 0.0
    %348 = vmatprep.subr.mxu0 0.0
    %349 = vmatpush1.msra.mxu0 0.0
    %350 = vmatprep.subr.mxu0 0.0
    %351 = vmatpush1.msra.mxu0 0.0
    %352 = vmatprep.subr.mxu0 0.0
    %353 = vmatpush1.msra.mxu0 0.0
    %354 = vmatprep.subr.mxu0 0.0
    %355 = vmatpush1.msra.mxu0 0.0
    %356 = vmatprep.subr.mxu0 0.0
    %357 = vmatpush1.msra.mxu0 0.0
    %358 = vmatprep.subr.mxu0 0.0
    %359 = vmatpush1.msra.mxu0 0.0
    %360 = vmatprep.subr.mxu0 0.0
    %361 = vmatpush1.msra.mxu0 0.0
    %362 = vmatprep.subr.mxu0 0.0
    %363 = vmatpush1.msra.mxu0 0.0
    %364 = vmatprep.subr.mxu0 0.0
    %365 = vmatpush1.msra.mxu0 0.0
    %366 = vmatprep.subr.mxu0 0.0
    %367 = vmatpush1.msra.mxu0 0.0
    %368 = vmatprep.subr.mxu0 0.0
    %369 = vmatpush1.msra.mxu0 0.0
    %370 = vmatprep.mubr.f32.mxu0 0.0
    %371 = vmatmul.mubr.f32.gmra.mrb[0].mxu0 %v283
    %v372 = vpop.f32.mrb[0].mxu0
    %v373 = vadd.f32 %v244, %v372
    %v374 = vpop.f32.mrb[0].mxu0
    %375 = vmatprep.mubr.f32.mxu0 0.0
    %376 = vmatmul.mubr.f32.gmra.mrb[0].mxu0 %v286
    %v377 = vpop.f32.mrb[0].mxu0
    %v378 = vadd.f32 %v249, %v377
    %v379 = vpop.f32.mrb[0].mxu0
    %380 = vmatprep.mubr.f32.mxu0 0.0
    %381 = vmatmul.mubr.f32.gmra.mrb[0].mxu0 %v289
    %v382 = vpop.f32.mrb[0].mxu0
    %v383 = vadd.f32 %v254, %v382
    %v384 = vpop.f32.mrb[0].mxu0
    %385 = vmatprep.mubr.f32.mxu0 0.0
    %386 = vmatmul.mubr.f32.gmra.mrb[0].mxu0 %v292
    %v387 = vpop.f32.mrb[0].mxu0
    %v388 = vadd.f32 %v259, %v387
    %v389 = vpop.f32.mrb[0].mxu0
    %390 = vmatprep.mubr.f32.mxu0 0.0
    %391 = vmatmul.mubr.f32.gmra.mrb[0].mxu0 %v295
    %v392 = vpop.f32.mrb[0].mxu0
    %v393 = vadd.f32 %v264, %v392
    %v394 = vpop.f32.mrb[0].mxu0
    %395 = vmatprep.mubr.f32.mxu0 0.0
    %396 = vmatmul.mubr.f32.gmra.mrb[0].mxu0 %v298
    %v397 = vpop.f32.mrb[0].mxu0
    %v398 = vadd.f32 %v269, %v397
    %v399 = vpop.f32.mrb[0].mxu0
    %400 = vmatprep.mubr.f32.mxu0 0.0
    %401 = vmatmul.mubr.f32.gmra.mrb[0].mxu0 %v301
    %v402 = vpop.f32.mrb[0].mxu0
    %v403 = vadd.f32 %v274, %v402
    %v404 = vpop.f32.mrb[0].mxu0
    %405 = vmatprep.mubr.f32.mxu0 0.0
    %406 = vmatmul.mubr.f32.gmra.mrb[0].mxu0 %v304
    %v407 = vpop.f32.mrb[0].mxu0
    %v408 = vadd.f32 %v279, %v407
    %v409 = vpop.f32.mrb[0].mxu0
    %410 = vdwg.mxu0
    %v411 = vmax.f32 %v373, 0.0
    %v412 = vmax.f32 %v378, 0.0
    %v413 = vmax.f32 %v383, 0.0
    %v414 = vmax.f32 %v388, 0.0
    %v415 = vmax.f32 %v393, 0.0
    %v416 = vmax.f32 %v398, 0.0
    %v417 = vmax.f32 %v403, 0.0
    %v418 = vmax.f32 %v408, 0.0
    %v419 = vld [vmem:[%s5] sm:$0xff]
    %v420 = vld [vmem:[%s5 + $0x8] sm:$0xff]
    %v421 = vld [vmem:[%s5 + $0x10] sm:$0xff]
    %v422 = vld [vmem:[%s5 + $0x18] sm:$0xff]
    %v423 = vld [vmem:[%s5 + $0x20] sm:$0xff]
    %v424 = vld [vmem:[%s5 + $0x28] sm:$0xff]
    %v425 = vld [vmem:[%s5 + $0x30] sm:$0xff]
    %v426 = vld [vmem:[%s5 + $0x38] sm:$0xff]
    %428 = vset.pattern.permute.xlu0 0
    %429 = vperm.xlu0 %428, %v419
    %v430 = vpop.permute.xlu0 %429
    %433 = vset.pattern.permute.xlu0 0
    %434 = vperm.xlu0 %433, %v420
    %v435 = vpop.permute.xlu0 %434
    %438 = vset.pattern.permute.xlu0 0
    %439 = vperm.xlu0 %438, %v421
    %v440 = vpop.permute.xlu0 %439
    %443 = vset.pattern.permute.xlu0 0
    %444 = vperm.xlu0 %443, %v422
    %v445 = vpop.permute.xlu0 %444
    %448 = vset.pattern.permute.xlu0 0
    %449 = vperm.xlu0 %448, %v423
    %v450 = vpop.permute.xlu0 %449
    %453 = vset.pattern.permute.xlu0 0
    %454 = vperm.xlu0 %453, %v424
    %v455 = vpop.permute.xlu0 %454
    %458 = vset.pattern.permute.xlu0 0
    %459 = vperm.xlu0 %458, %v425
    %v460 = vpop.permute.xlu0 %459
    %463 = vset.pattern.permute.xlu0 0
    %464 = vperm.xlu0 %463, %v426
    %v465 = vpop.permute.xlu0 %464
    %v467 = vmul.f32 %v411, %v430
    %v468 = vmul.f32 %v412, %v435
    %v469 = vmul.f32 %v413, %v440
    %v470 = vmul.f32 %v414, %v445
    %v471 = vmul.f32 %v415, %v450
    %v472 = vmul.f32 %v416, %v455
    %v473 = vmul.f32 %v417, %v460
    %v474 = vmul.f32 %v418, %v465
    %vm475 = vcmask 64512
    %v476 = vsel %vm475, %v467, 0.0
    %v477 = vsel %vm475, %v468, 0.0
    %v478 = vadd.f32 %v476, %v477
    %v479 = vsel %vm475, %v469, 0.0
    %v480 = vadd.f32 %v478, %v479
    %v481 = vsel %vm475, %v470, 0.0
    %v482 = vadd.f32 %v480, %v481
    %v483 = vsel %vm475, %v471, 0.0
    %v484 = vadd.f32 %v482, %v483
    %v485 = vsel %vm475, %v472, 0.0
    %v486 = vadd.f32 %v484, %v485
    %v487 = vsel %vm475, %v473, 0.0
    %v488 = vadd.f32 %v486, %v487
    %v489 = vsel %vm475, %v474, 0.0
    %v490 = vadd.f32 %v488, %v489
    %v491 = vrot.slane %v490, 4
    %v492 = vadd.f32 %v490, %v491
    %v493 = vrot.slane %v492, 2
    %v494 = vadd.f32 %v492, %v493
    %v495 = vrot.slane %v494, 1
    %v496 = vadd.f32 %v494, %v495
    %v497 = vld [vmem:[#allocation2] sm:$0x1]
    %499 = vset.pattern.permute.xlu0 0
    %500 = vperm.xlu0 %499, %v497
    %v501 = vpop.permute.xlu0 %500
    %v503 = vlaneseq
    %v504 = vshrl.u32 %v503, 7
    %v505 = vsub.s32 0, %v504
    %v506 = vrot.slane %v501, %v505
    %v507 = vadd.f32 %v496, %v506
    %vm508 = vcmask 57344
    %509 = vst.msk [vmem:[#allocation3] sm:$0x1] %vm508, %v507
    // Predicated region
    $region30: #{tpu_custom_call.1} parent=1 // pred_check
      _
    $region31: #{tpu_custom_call.1} parent=1 // pred_check_branch
      %511 = sbr.rel (0) target = $region33
    $region32: #{tpu_custom_call.1} parent=1 // pred_region
      %s513 = ssub.s32 16, 16
      %514 = vsyncadd [#allocation4], %s513
      %s516 = sshll.u32 [#allocation3], 4
      %s517 = int_to_ptr.vmem [resolvable:$true] %s516
      %519 = dma.vmem_to_hbm [thread:$0]  %s517, 16, %s7, [#allocation4]
    $region33: #{tpu_custom_call.1} parent=1 // pred_fallthru
      _
    // Predicated region
    $region34: #{tpu_custom_call.1} parent=1 // pred_check
      _
    $region35: #{tpu_custom_call.1} parent=1 // pred_check_branch
      %521 = sbr.rel (0) target = $region37
    $region36: #{tpu_custom_call.1} parent=1 // pred_region
      %522 = dma.done [#allocation4], 16
    $region37: #{tpu_custom_call.1} parent=1 // pred_fallthru
      _
    %523 = vsyncpa [#allocation4], 1

</llo_original>
